<compile_context>
chip_gen: v5e
topology: v5e:2x2
jax: 0.10.0
libtpu: 0.0.40
codegen_flags: <defaults>
</compile_context>

<pallas_src>
import math

import jax
import jax.numpy as jnp
from jax.experimental import pallas as pl
from jax.experimental.pallas import tpu as pltpu


def _elu(x):
    # F.elu, alpha=1.0.  exp() argument clamped so the untaken branch can't overflow.
    return jnp.where(x > 0, x, jnp.exp(jnp.minimum(x, 0.0)) - 1.0)


def decoder_layer_kernel(x_ref, wqkv_ref, bqkv_ref, wo_ref, bo_ref, w2_ref, b2_ref,
                         y_ref, attn_ref=None):
    TB, L, D = x_ref.shape                       # one grid step = TB batch elements
    Lsf = w2_ref.shape[0]
    mmdt = wqkv_ref.dtype                        # MXU operand dtype (f32 or bf16)

    x = x_ref[...]                               # (TB, L, D)
    x2 = x.reshape(TB * L, D)                    # leading-dim merge (layout no-op)
    xm = x2.astype(mmdt)

    # --- Q/K/V projections: three tile-aligned (D, D) matmuls -------------------
    # Leading-dim indexing of the stacked (3, D, D) weight is a contiguous VMEM
    # view; no sub-128-lane slicing of a fused (TB*L, 3D) result is needed.
    def proj(i):
        return (jnp.dot(xm, wqkv_ref[i], preferred_element_type=jnp.float32)
                + bqkv_ref[i]).reshape(TB, L, D)

    q, k, v = proj(0), proj(1), proj(2)          # each (TB, L, D) f32

    # --- single-head scaled dot-product attention, batched over TB --------------
    # TODO(synk): attn_mask is None on the reference call path; no masking applied.
    scale = 1.0 / math.sqrt(D)
    s = jnp.einsum('bld,bmd->blm', q.astype(mmdt), k.astype(mmdt),
                   preferred_element_type=jnp.float32) * scale          # (TB, L, L)
    s = s - jnp.max(s, axis=-1, keepdims=True)                          # stable softmax
    e = jnp.exp(s)
    denom = jnp.sum(e, axis=-1, keepdims=True)
    r = pl.reciprocal(denom, approx=True)                               # EUP slot
    r = r * (2.0 - denom * r)                    # one Newton step -> rows sum to ~1
    attn = e * r                                                        # (TB, L, L) f32
    ctx = jnp.einsum('blm,bmd->bld', attn.astype(mmdt), v.astype(mmdt),
                     preferred_element_type=jnp.float32)                # (TB, L, D)

    new_x = jnp.dot(ctx.reshape(TB * L, D).astype(mmdt), wo_ref[...],
                    preferred_element_type=jnp.float32) + bo_ref[...]   # (TB*L, D)

    # --- residual; dropout == identity in eval ----------------------------------
    y1 = (x2 + new_x).astype(mmdt)                                      # (TB*L, D)

    # --- linear2 over the sequence axis + ELU, straight into (TB, Lsf, D) -------
    #   elu(linear2(y.transpose(-1,-2))).transpose(-1,-2)[b] == elu(W2 @ y1_b + b2[:,None])
    if TB == 1:
        out2 = jnp.dot(w2_ref[...], y1.reshape(L, D),
                       preferred_element_type=jnp.float32).reshape(1, Lsf, D)
    else:
        w2b = jnp.broadcast_to(w2_ref[...], (TB, Lsf, L))
        out2 = jnp.einsum('bsl,bld->bsd', w2b, y1.reshape(TB, L, D),
                          preferred_element_type=jnp.float32)           # (TB, Lsf, D)
    out2 = out2 + b2_ref[...]                    # single broadcast bias add (VPU)

    y_ref[...] = _elu(out2).astype(y_ref.dtype)  # direct (TB, Lsf, D) store
    if attn_ref is not None:
        attn_ref[...] = attn.astype(attn_ref.dtype)


# ------------------------------ wrapper ----------------------------------------

def _pick_batch_block(batch, max_steps=8):
    """Largest step count <= max_steps dividing B -> >=2 grid steps when possible
    (v7x megacore + DMA/compute pipelining) while keeping per-step work chunky."""
    for steps in range(min(batch, max_steps), 0, -1):
        if batch % steps == 0:
            return batch // steps
    return batch


def _vmem_bytes_estimate(TB, L, D, Lsf, io_itemsize, return_attn):
    """Rough per-step VMEM upper bound: double-buffered I/O blocks + resident
    weights + f32 intermediates."""
    io = TB * L * D + TB * Lsf * D + (TB * L * L if return_attn else 0)
    io_bytes = 2 * io * io_itemsize                      # double-buffered blocks
    w_bytes = (3 * D * D + 3 * D + D * D + D + Lsf * L + Lsf) * 4
    inter = (3 * TB * L * D            # q, k, v
             + 3 * TB * L * L          # s, e, attn
             + 2 * TB * L * D          # ctx, y1
             + TB * Lsf * D)           # out2
    return io_bytes + w_bytes + inter * 4


def separate_decoder_layer_forward(x, kparams, *, batch_block=None, return_attn=True):
    """x: (B, L, D).  Returns (y: (B, L*sf, D), attn: (B, L, L) or None)."""
    B, L, D = x.shape
    Lsf, Lw = kparams["w2"].shape
    assert Lw == L, (Lw, L)

    TB = _pick_batch_block(B) if batch_block is None else batch_block
    assert B % TB == 0, (B, TB)
    grid = (B // TB,)

    # VMEM budget guard: only raise the scoped limit when the estimate needs it.
    # TODO(synk): on v7x (64 MiB physical VMEM) large L/D should move to a
    # flash-style L-tiled kernel rather than just raising the limit.
    est = _vmem_bytes_estimate(TB, L, D, Lsf, x.dtype.itemsize, return_attn)
    vmem_limit = None
    if est > (32 << 20):
        vmem_limit = min(2 * est, 96 << 20)

    # Advisory cost estimate so XLA schedules surrounding ops sensibly.
    w_bytes = sum(int(v.size) * v.dtype.itemsize for v in kparams.values())
    itemsize = x.dtype.itemsize
    flops = (2 * B * L * D * D * 4          # q/k/v/out projections
             + 2 * B * L * L * D * 2        # QK^T and attn @ V
             + 2 * B * Lsf * L * D)         # linear2
    bytes_accessed = (B * L * D + B * Lsf * D
                      + (B * L * L if return_attn else 0)) * itemsize + w_bytes
    cost = pl.CostEstimate(flops=flops,
                           transcendentals=B * L * L + B * Lsf * D,
                           bytes_accessed=bytes_accessed)

    in_specs = [
        pl.BlockSpec((TB, L, D), lambda g: (g, 0, 0)),       # x
        pl.BlockSpec((3, D, D), lambda g: (0, 0, 0)),        # stacked Wq/Wk/Wv
        pl.BlockSpec((3, 1, D), lambda g: (0, 0, 0)),        # stacked bq/bk/bv
        pl.BlockSpec((D, D), lambda g: (0, 0)),              # Wo
        pl.BlockSpec((1, D), lambda g: (0, 0)),              # bo
        pl.BlockSpec((Lsf, L), lambda g: (0, 0)),            # W2
        pl.BlockSpec((Lsf, 1), lambda g: (0, 0)),            # b2
    ]
    y_sds = jax.ShapeDtypeStruct((B, Lsf, D), x.dtype)
    y_spec = pl.BlockSpec((TB, Lsf, D), lambda g: (g, 0, 0))
    if return_attn:
        out_shape = (y_sds, jax.ShapeDtypeStruct((B, L, L), x.dtype))
        out_specs = (y_spec, pl.BlockSpec((TB, L, L), lambda g: (g, 0, 0)))
    else:
        out_shape = y_sds
        out_specs = y_spec

    out = pl.pallas_call(
        decoder_layer_kernel,
        out_shape=out_shape,
        grid_spec=pltpu.PrefetchScalarGridSpec(
            num_scalar_prefetch=0,
            grid=grid,
            in_specs=in_specs,
            out_specs=out_specs),
        compiler_params=pltpu.CompilerParams(
            dimension_semantics=("parallel",),
            vmem_limit_bytes=vmem_limit),
        cost_estimate=cost,
    )(x, kparams["wqkv"], kparams["bqkv"], kparams["wo"], kparams["bo"],
      kparams["w2"], kparams["b2"])

    if return_attn:
        y, attn = out
        return y, attn
    return out, None


# ----------------------------- parameters -------------------------------------

def init_torch_params(key, d_model, step, separate_factor):
    """nn.Linear-style params in PyTorch (out_features, in_features) layout."""
    ks = jax.random.split(key, 10)

    def linear(kw, kb, out_f, in_f):
        s = 1.0 / math.sqrt(in_f)
        w = jax.random.uniform(kw, (out_f, in_f), jnp.float32, -s, s)
        b = jax.random.uniform(kb, (out_f,), jnp.float32, -s, s)
        return w, b

    wq, bq = linear(ks[0], ks[1], d_model, d_model)
    wk, bk = linear(ks[2], ks[3], d_model, d_model)
    wv, bv = linear(ks[4], ks[5], d_model, d_model)
    wo, bo = linear(ks[6], ks[7], d_model, d_model)
    lsf = step * separate_factor
    w2, b2 = linear(ks[8], ks[9], lsf, step)
    return dict(wq=wq, bq=bq, wk=wk, bk=bk, wv=wv, bv=bv, wo=wo, bo=bo,
                w2=w2, b2=b2)


def prepare_kernel_params(p, *, matmul_dtype=jnp.float32):
    """One-time weight repacking into the layouts the kernel consumes.

    matmul_dtype: set to jnp.bfloat16 on v6e/v7x to feed the MXU bf16 operands
    (f32 accumulation and all element-wise math stay f32 inside the kernel).
    """
    wdt = matmul_dtype
    wqkv = jnp.stack([p["wq"].T, p["wk"].T, p["wv"].T]).astype(wdt)            # (3, D, D)
    bqkv = jnp.stack([p["bq"], p["bk"], p["bv"]])[:, None, :].astype(jnp.float32)  # (3,1,D)
    wo = p["wo"].T.astype(wdt)                                                 # (D, D)
    bo = p["bo"].reshape(1, -1).astype(jnp.float32)                            # (1, D)
    w2 = p["w2"].astype(wdt)                                                   # (Lsf, L)
    b2 = p["b2"].reshape(-1, 1).astype(jnp.float32)                            # (Lsf, 1)
    return dict(wqkv=wqkv, bqkv=bqkv, wo=wo, bo=bo, w2=w2, b2=b2)


def reference_forward(x, p):
    """Pure-JAX mirror of the PyTorch forward (eval mode, attn_mask=None)."""
    D = x.shape[-1]
    q = x @ p["wq"].T + p["bq"]
    k = x @ p["wk"].T + p["bk"]
    v = x @ p["wv"].T + p["bv"]
    s = (q @ jnp.swapaxes(k, -1, -2)) / math.sqrt(D)
    attn = jax.nn.softmax(s, axis=-1)
    new_x = (attn @ v) @ p["wo"].T + p["bo"]
    y = x + new_x                                      # dropout = identity (eval)
    y_t = jnp.swapaxes(y, -1, -2)                      # (B, D, L)
    z = y_t @ p["w2"].T + p["b2"]                      # linear2 -> (B, D, Lsf)
    y = jnp.swapaxes(jax.nn.elu(z), -1, -2)            # (B, Lsf, D)
    return y, attn


if __name__ == "__main__":
    # Small shapes consistent with the module: step == seq_len.
    B, L, D, SF = 2, 8, 32, 2        # batch, seq(step), d_model, separate_factor

    key = jax.random.PRNGKey(0)
    kx, kp = jax.random.split(key)
    x = jax.random.normal(kx, (B, L, D), jnp.float32)
    torch_params = init_torch_params(kp, d_model=D, step=L, separate_factor=SF)
    kparams = prepare_kernel_params(torch_params)      # f32 MXU operands for the check

    y, attn = separate_decoder_layer_forward(x, kparams)
    jax.block_until_ready((y, attn))

    assert y.shape == (B, L * SF, D), y.shape
    assert attn.shape == (B, L, L), attn.shape

    # Correctness check against a pure-JAX reference.  Newton-refined reciprocal
    # lets the tolerance come back down from the previous 2e-2.
    y_ref, attn_ref = reference_forward(x, torch_params)
    assert jnp.allclose(attn, attn_ref, atol=1e-3, rtol=1e-3), \
        float(jnp.max(jnp.abs(attn - attn_ref)))
    assert jnp.allclose(y, y_ref, atol=1e-3, rtol=1e-3), \
        float(jnp.max(jnp.abs(y - y_ref)))

    # Also exercise the attn-free variant (no second output stream).
    y2, _ = separate_decoder_layer_forward(x, kparams, return_attn=False)
    jax.block_until_ready(y2)
    assert jnp.allclose(y2, y_ref, atol=1e-3, rtol=1e-3)

    print("KERNEL_OK")
</pallas_src>

<mosaic_0001>
module attributes {stable_mosaic.version = 11 : i64} {
  func.func @decoder_layer_kernel(%arg0: i32, %arg1: memref<1x8x32xf32, #tpu.memory_space<vmem>>, %arg2: memref<3x32x32xf32, #tpu.memory_space<vmem>>, %arg3: memref<3x1x32xf32, #tpu.memory_space<vmem>>, %arg4: memref<32x32xf32, #tpu.memory_space<vmem>>, %arg5: memref<1x32xf32, #tpu.memory_space<vmem>>, %arg6: memref<16x8xf32, #tpu.memory_space<vmem>>, %arg7: memref<16x1xf32, #tpu.memory_space<vmem>>, %arg8: memref<1x16x32xf32, #tpu.memory_space<vmem>>, %arg9: memref<1x8x8xf32, #tpu.memory_space<vmem>>) attributes {dimension_semantics = [#tpu.dimension_semantics<parallel>], iteration_bounds = array<i64: 2>, scalar_prefetch = 0 : i64, scratch_operands = 0 : i64, tpu.core_type = #tpu.core_type<tc>, window_params = [{transform_indices = @transform_0, window_bounds = array<i64: 1, 8, 32>}, {pipeline_mode = #tpu.pipeline_mode<synchronous>, transform_indices = @transform_1, window_bounds = array<i64: 3, 32, 32>}, {pipeline_mode = #tpu.pipeline_mode<synchronous>, transform_indices = @transform_2, window_bounds = array<i64: 3, 1, 32>}, {pipeline_mode = #tpu.pipeline_mode<synchronous>, transform_indices = @transform_3, window_bounds = array<i64: 32, 32>}, {pipeline_mode = #tpu.pipeline_mode<synchronous>, transform_indices = @transform_4, window_bounds = array<i64: 1, 32>}, {pipeline_mode = #tpu.pipeline_mode<synchronous>, transform_indices = @transform_5, window_bounds = array<i64: 16, 8>}, {pipeline_mode = #tpu.pipeline_mode<synchronous>, transform_indices = @transform_6, window_bounds = array<i64: 16, 1>}, {transform_indices = @transform_7, window_bounds = array<i64: 1, 16, 32>}, {transform_indices = @transform_8, window_bounds = array<i64: 1, 8, 8>}]} {
    %c0 = arith.constant 0 : index
    %c0_0 = arith.constant 0 : index
    %c0_1 = arith.constant 0 : index
    %0 = vector.load %arg1[%c0, %c0_0, %c0_1] : memref<1x8x32xf32, #tpu.memory_space<vmem>>, vector<1x8x32xf32>
    %1 = vector.shape_cast %0 : vector<1x8x32xf32> to vector<8x32xf32>
    %c0_2 = arith.constant 0 : index
    %c0_3 = arith.constant 0 : index
    %c0_4 = arith.constant 0 : index
    %2 = vector.load %arg2[%c0_2, %c0_3, %c0_4] : memref<3x32x32xf32, #tpu.memory_space<vmem>>, vector<1x32x32xf32>
    %3 = vector.shape_cast %2 : vector<1x32x32xf32> to vector<32x32xf32>
    %cst = arith.constant dense<0.000000e+00> : vector<8x32xf32>
    %4 = tpu.matmul %1, %3, %cst {dimension_numbers = #tpu.dot_dimension_numbers<[1], [0], [0], [1], [0, 0, 1, 1], [], []>} : vector<8x32xf32>, vector<32x32xf32>, vector<8x32xf32> -> vector<8x32xf32>
    %c0_5 = arith.constant 0 : index
    %c0_6 = arith.constant 0 : index
    %c0_7 = arith.constant 0 : index
    %5 = vector.load %arg3[%c0_5, %c0_6, %c0_7] : memref<3x1x32xf32, #tpu.memory_space<vmem>>, vector<1x1x32xf32>
    %6 = vector.shape_cast %5 : vector<1x1x32xf32> to vector<1x32xf32>
    %7 = vector.broadcast %6 : vector<1x32xf32> to vector<8x32xf32>
    %8 = arith.addf %4, %7 : vector<8x32xf32>
    %9 = vector.shape_cast %8 : vector<8x32xf32> to vector<1x8x32xf32>
    %c1 = arith.constant 1 : index
    %c0_8 = arith.constant 0 : index
    %c0_9 = arith.constant 0 : index
    %10 = vector.load %arg2[%c1, %c0_8, %c0_9] : memref<3x32x32xf32, #tpu.memory_space<vmem>>, vector<1x32x32xf32>
    %11 = vector.shape_cast %10 : vector<1x32x32xf32> to vector<32x32xf32>
    %cst_10 = arith.constant dense<0.000000e+00> : vector<8x32xf32>
    %12 = tpu.matmul %1, %11, %cst_10 {dimension_numbers = #tpu.dot_dimension_numbers<[1], [0], [0], [1], [0, 0, 1, 1], [], []>} : vector<8x32xf32>, vector<32x32xf32>, vector<8x32xf32> -> vector<8x32xf32>
    %c1_11 = arith.constant 1 : index
    %c0_12 = arith.constant 0 : index
    %c0_13 = arith.constant 0 : index
    %13 = vector.load %arg3[%c1_11, %c0_12, %c0_13] : memref<3x1x32xf32, #tpu.memory_space<vmem>>, vector<1x1x32xf32>
    %14 = vector.shape_cast %13 : vector<1x1x32xf32> to vector<1x32xf32>
    %15 = vector.broadcast %14 : vector<1x32xf32> to vector<8x32xf32>
    %16 = arith.addf %12, %15 : vector<8x32xf32>
    %17 = vector.shape_cast %16 : vector<8x32xf32> to vector<1x8x32xf32>
    %c2 = arith.constant 2 : index
    %c0_14 = arith.constant 0 : index
    %c0_15 = arith.constant 0 : index
    %18 = vector.load %arg2[%c2, %c0_14, %c0_15] : memref<3x32x32xf32, #tpu.memory_space<vmem>>, vector<1x32x32xf32>
    %19 = vector.shape_cast %18 : vector<1x32x32xf32> to vector<32x32xf32>
    %cst_16 = arith.constant dense<0.000000e+00> : vector<8x32xf32>
    %20 = tpu.matmul %1, %19, %cst_16 {dimension_numbers = #tpu.dot_dimension_numbers<[1], [0], [0], [1], [0, 0, 1, 1], [], []>} : vector<8x32xf32>, vector<32x32xf32>, vector<8x32xf32> -> vector<8x32xf32>
    %c2_17 = arith.constant 2 : index
    %c0_18 = arith.constant 0 : index
    %c0_19 = arith.constant 0 : index
    %21 = vector.load %arg3[%c2_17, %c0_18, %c0_19] : memref<3x1x32xf32, #tpu.memory_space<vmem>>, vector<1x1x32xf32>
    %22 = vector.shape_cast %21 : vector<1x1x32xf32> to vector<1x32xf32>
    %23 = vector.broadcast %22 : vector<1x32xf32> to vector<8x32xf32>
    %24 = arith.addf %20, %23 : vector<8x32xf32>
    %25 = vector.shape_cast %24 : vector<8x32xf32> to vector<1x8x32xf32>
    "tpu.trace_start"() <{level = 10 : i32, message = "bld,bmd->blm"}> : () -> ()
    %cst_20 = arith.constant dense<0.000000e+00> : vector<1x8x8xf32>
    %26 = tpu.matmul %9, %17, %cst_20 {dimension_numbers = #tpu.dot_dimension_numbers<[2], [2], [1], [1], [0, 0, 0, 1, 1, 1], [0], [0]>} : vector<1x8x32xf32>, vector<1x8x32xf32>, vector<1x8x8xf32> -> vector<1x8x8xf32>
    "tpu.trace_stop"() : () -> ()
    %cst_21 = arith.constant 0.176776692 : f32
    %27 = vector.broadcast %cst_21 : f32 to vector<1x8x8xf32>
    %28 = arith.mulf %26, %27 : vector<1x8x8xf32>
    %cst_22 = arith.constant dense<0xFF800000> : vector<1x8xf32>
    %29 = vector.multi_reduction <maximumf>, %28, %cst_22 [2] : vector<1x8x8xf32> to vector<1x8xf32>
    %30 = vector.shape_cast %29 : vector<1x8xf32> to vector<1x8x1xf32>
    %31 = vector.broadcast %30 : vector<1x8x1xf32> to vector<1x8x8xf32>
    %32 = arith.subf %28, %31 : vector<1x8x8xf32>
    %33 = math.exp %32 : vector<1x8x8xf32>
    %cst_23 = arith.constant dense<0.000000e+00> : vector<1x8xf32>
    %34 = vector.multi_reduction <add>, %33, %cst_23 [2] : vector<1x8x8xf32> to vector<1x8xf32>
    %35 = vector.shape_cast %34 : vector<1x8xf32> to vector<1x8x1xf32>
    %36 = tpu.reciprocal %35 {approx = true} : vector<1x8x1xf32> -> vector<1x8x1xf32>
    %37 = arith.mulf %35, %36 : vector<1x8x1xf32>
    %cst_24 = arith.constant 2.000000e+00 : f32
    %38 = vector.broadcast %cst_24 : f32 to vector<1x8x1xf32>
    %39 = arith.subf %38, %37 : vector<1x8x1xf32>
    %40 = arith.mulf %36, %39 : vector<1x8x1xf32>
    %41 = vector.broadcast %40 : vector<1x8x1xf32> to vector<1x8x8xf32>
    %42 = arith.mulf %33, %41 : vector<1x8x8xf32>
    "tpu.trace_start"() <{level = 10 : i32, message = "blm,bmd->bld"}> : () -> ()
    %cst_25 = arith.constant dense<0.000000e+00> : vector<1x8x32xf32>
    %43 = tpu.matmul %42, %25, %cst_25 {dimension_numbers = #tpu.dot_dimension_numbers<[2], [1], [1], [2], [0, 0, 0, 1, 1, 2], [0], [0]>} : vector<1x8x8xf32>, vector<1x8x32xf32>, vector<1x8x32xf32> -> vector<1x8x32xf32>
    "tpu.trace_stop"() : () -> ()
    %44 = vector.shape_cast %43 : vector<1x8x32xf32> to vector<8x32xf32>
    %c0_26 = arith.constant 0 : index
    %c0_27 = arith.constant 0 : index
    %45 = vector.load %arg4[%c0_26, %c0_27] : memref<32x32xf32, #tpu.memory_space<vmem>>, vector<32x32xf32>
    %cst_28 = arith.constant dense<0.000000e+00> : vector<8x32xf32>
    %46 = tpu.matmul %44, %45, %cst_28 {dimension_numbers = #tpu.dot_dimension_numbers<[1], [0], [0], [1], [0, 0, 1, 1], [], []>} : vector<8x32xf32>, vector<32x32xf32>, vector<8x32xf32> -> vector<8x32xf32>
    %c0_29 = arith.constant 0 : index
    %c0_30 = arith.constant 0 : index
    %47 = vector.load %arg5[%c0_29, %c0_30] : memref<1x32xf32, #tpu.memory_space<vmem>>, vector<1x32xf32>
    %48 = vector.broadcast %47 : vector<1x32xf32> to vector<8x32xf32>
    %49 = arith.addf %46, %48 : vector<8x32xf32>
    %50 = arith.addf %1, %49 : vector<8x32xf32>
    %c0_31 = arith.constant 0 : index
    %c0_32 = arith.constant 0 : index
    %51 = vector.load %arg6[%c0_31, %c0_32] : memref<16x8xf32, #tpu.memory_space<vmem>>, vector<16x8xf32>
    %cst_33 = arith.constant dense<0.000000e+00> : vector<16x32xf32>
    %52 = tpu.matmul %51, %50, %cst_33 {dimension_numbers = #tpu.dot_dimension_numbers<[1], [0], [0], [1], [0, 0, 1, 1], [], []>} : vector<16x8xf32>, vector<8x32xf32>, vector<16x32xf32> -> vector<16x32xf32>
    %53 = vector.shape_cast %52 : vector<16x32xf32> to vector<1x16x32xf32>
    %c0_34 = arith.constant 0 : index
    %c0_35 = arith.constant 0 : index
    %54 = vector.load %arg7[%c0_34, %c0_35] : memref<16x1xf32, #tpu.memory_space<vmem>>, vector<16x1xf32>
    %55 = vector.shape_cast %54 : vector<16x1xf32> to vector<1x16x1xf32>
    %56 = vector.broadcast %55 : vector<1x16x1xf32> to vector<1x16x32xf32>
    %57 = arith.addf %53, %56 : vector<1x16x32xf32>
    %cst_36 = arith.constant 0.000000e+00 : f32
    %58 = vector.broadcast %cst_36 : f32 to vector<1x16x32xf32>
    %59 = arith.cmpf ogt, %57, %58 : vector<1x16x32xf32>
    %cst_37 = arith.constant 0.000000e+00 : f32
    %60 = vector.broadcast %cst_37 : f32 to vector<1x16x32xf32>
    %61 = arith.minimumf %57, %60 : vector<1x16x32xf32>
    %62 = math.exp %61 : vector<1x16x32xf32>
    %cst_38 = arith.constant 1.000000e+00 : f32
    %63 = vector.broadcast %cst_38 : f32 to vector<1x16x32xf32>
    %64 = arith.subf %62, %63 : vector<1x16x32xf32>
    %65 = arith.select %59, %57, %64 : vector<1x16x32xi1>, vector<1x16x32xf32>
    %c0_39 = arith.constant 0 : index
    %c0_40 = arith.constant 0 : index
    %c0_41 = arith.constant 0 : index
    %66 = vector.load %arg8[%c0_39, %c0_40, %c0_41] : memref<1x16x32xf32, #tpu.memory_space<vmem>>, vector<1x16x32xf32>
    tpu.vector_store %arg8[%c0_39, %c0_40, %c0_41], %65 {strides = array<i32>} : memref<1x16x32xf32, #tpu.memory_space<vmem>>, vector<1x16x32xf32>,
    %c0_42 = arith.constant 0 : index
    %c0_43 = arith.constant 0 : index
    %c0_44 = arith.constant 0 : index
    %67 = vector.load %arg9[%c0_42, %c0_43, %c0_44] : memref<1x8x8xf32, #tpu.memory_space<vmem>>, vector<1x8x8xf32>
    tpu.vector_store %arg9[%c0_42, %c0_43, %c0_44], %42 {strides = array<i32>} : memref<1x8x8xf32, #tpu.memory_space<vmem>>, vector<1x8x8xf32>,
    return
  }
  func.func @transform_0(%arg0: i32) -> (i32, i32, i32) {
    %c0_i32 = arith.constant 0 : i32
    %c0_i32_0 = arith.constant 0 : i32
    %c0_i32_1 = arith.constant 0 : i32
    return %arg0, %c0_i32, %c0_i32_0 : i32, i32, i32
  }
  func.func @transform_1(%arg0: i32) -> (i32, i32, i32) {
    %c0_i32 = arith.constant 0 : i32
    %c0_i32_0 = arith.constant 0 : i32
    %c0_i32_1 = arith.constant 0 : i32
    %c0_i32_2 = arith.constant 0 : i32
    return %c0_i32, %c0_i32_0, %c0_i32_1 : i32, i32, i32
  }
  func.func @transform_2(%arg0: i32) -> (i32, i32, i32) {
    %c0_i32 = arith.constant 0 : i32
    %c0_i32_0 = arith.constant 0 : i32
    %c0_i32_1 = arith.constant 0 : i32
    %c0_i32_2 = arith.constant 0 : i32
    return %c0_i32, %c0_i32_0, %c0_i32_1 : i32, i32, i32
  }
  func.func @transform_3(%arg0: i32) -> (i32, i32) {
    %c0_i32 = arith.constant 0 : i32
    %c0_i32_0 = arith.constant 0 : i32
    %c0_i32_1 = arith.constant 0 : i32
    return %c0_i32, %c0_i32_0 : i32, i32
  }
  func.func @transform_4(%arg0: i32) -> (i32, i32) {
    %c0_i32 = arith.constant 0 : i32
    %c0_i32_0 = arith.constant 0 : i32
    %c0_i32_1 = arith.constant 0 : i32
    return %c0_i32, %c0_i32_0 : i32, i32
  }
  func.func @transform_5(%arg0: i32) -> (i32, i32) {
    %c0_i32 = arith.constant 0 : i32
    %c0_i32_0 = arith.constant 0 : i32
    %c0_i32_1 = arith.constant 0 : i32
    return %c0_i32, %c0_i32_0 : i32, i32
  }
  func.func @transform_6(%arg0: i32) -> (i32, i32) {
    %c0_i32 = arith.constant 0 : i32
    %c0_i32_0 = arith.constant 0 : i32
    %c0_i32_1 = arith.constant 0 : i32
    return %c0_i32, %c0_i32_0 : i32, i32
  }
  func.func @transform_7(%arg0: i32) -> (i32, i32, i32) {
    %c0_i32 = arith.constant 0 : i32
    %c0_i32_0 = arith.constant 0 : i32
    %c0_i32_1 = arith.constant 0 : i32
    return %arg0, %c0_i32, %c0_i32_0 : i32, i32, i32
  }
  func.func @transform_8(%arg0: i32) -> (i32, i32, i32) {
    %c0_i32 = arith.constant 0 : i32
    %c0_i32_0 = arith.constant 0 : i32
    %c0_i32_1 = arith.constant 0 : i32
    return %arg0, %c0_i32, %c0_i32_0 : i32, i32, i32
  }
}

</mosaic_0001>

<llo_original>
// kernel: tpu_custom_call.1
$region0: #{tpu_custom_call.1}
  #allocation0 [shape = 'u32[]', space=smem, size = 0x4, offset = 0x4, fixed_abs, tag = 'smem constant byte address 0x4 - core index']
  #allocation1 [shape = 'u32[72,128]{1,0:T(1,128)}', space=vmem, size = 0x9000, scoped, tag = 'internal scratch']
  %s0 = inlined_call_operand.hbm [shape: f32[2,8,32], index: 0, kind: input, shape index: {}]
  %s1 = inlined_call_operand.hbm [shape: f32[3,32,32], index: 1, kind: input, shape index: {}]
  %s2 = inlined_call_operand.vmem [shape: f32[3,1,32], index: 2, kind: input, shape index: {}]
  %s3 = inlined_call_operand.vmem [shape: f32[32,32], index: 3, kind: input, shape index: {}]
  %s4 = inlined_call_operand.vmem [shape: f32[1,32], index: 4, kind: input, shape index: {}]
  %s5 = inlined_call_operand.vmem [shape: f32[16,8], index: 5, kind: input, shape index: {}]
  %s6 = inlined_call_operand.vmem [shape: f32[16,1], index: 6, kind: input, shape index: {}]
  %s7 = inlined_call_operand.hbm [shape: f32[2,16,32], index: 7, kind: output, shape index: {0}]
  %s8 = inlined_call_operand.hbm [shape: f32[2,8,8], index: 8, kind: output, shape index: {1}]
  %9 = xla_tuple %s7, %s8
  %s10 = sld [smem:[#allocation0]]
  $region77: #{tpu_custom_call.1} parent=0
    _
  %s12 = ssub.s32 1, %s10
  %s13 = scalar_select 0, %s12, %s10
  $region1: #{tpu_custom_call.1} parent=0
    #allocation2 [shape = 'u8[8192]{0}', space=vmem, size = 0x2000, scoped, tag = 'input window, operand 0']
    #allocation3 [shape = 's32[2]{0}', space=sflag, size = 0x8, scoped, tag = 'scoped memory for tpu_custom_call.1']
    #allocation4 [shape = 's32[2]{0}', space=sflag, size = 0x8, scoped, tag = 'scoped memory for tpu_custom_call.1']
    #allocation5 [shape = 'u8[49152]{0}', space=vmem, size = 0xc000, scoped, tag = 'input window, operand 1, single buffered']
    #allocation6 [shape = 's32[1]{0}', space=sflag, size = 0x4, scoped, tag = 'scoped memory for tpu_custom_call.1']
    #allocation7 [shape = 'u8[16384]{0}', space=vmem, size = 0x4000, scoped, tag = 'output window, operand 0']
    #allocation8 [shape = 'u8[8192]{0}', space=vmem, size = 0x2000, scoped, tag = 'output window, operand 1']
    #allocation9 [shape = 's32[2]{0}', space=sflag, size = 0x8, scoped, tag = 'scoped memory for tpu_custom_call.1']
    %14 = vsyncpa [#allocation3], 0
    %s15 = scalar_lea.sflag [#allocation3], 1
    %16 = vsyncpa %s15, 0
    %17 = vsyncpa [#allocation6], 0
    %18 = vsyncpa [#allocation4], 0
    %s19 = scalar_lea.sflag [#allocation4], 1
    %20 = vsyncpa %s19, 0
    %21 = vsyncpa [#allocation9], 0
    %s22 = scalar_lea.sflag [#allocation9], 1
    %23 = vsyncpa %s22, 0
    loop: start=0, step=1, limit=4
    $region2: #{tpu_custom_call.1} parent=1 // loop_pre_header
      _
    $region3: #{tpu_custom_call.1} parent=1 // loop_header
      %s25 = sphi 0, %s29
      %p26 = scmp.ge.s32.totalorder %s25, 4
      %s35 = sphi 0, %s37
      %s38 = sphi 0, %s35
      %s39 = sphi 0, %s38
      %s55 = sphi 0, %s39
      %s59 = sphi 0, %s59
      %s61 = sphi 0, %s59
      %s62 = sphi 0, %s61
      %s76 = sphi 0, %s62
      %s80 = sphi 0, %s80
      %s82 = sphi 0, %s80
      %s83 = sphi 0, %s82
      %s97 = sphi 0, %s83
      %s101 = sphi 0, %s101
      %s103 = sphi 0, %s101
      %s104 = sphi 0, %s103
      %s118 = sphi 0, %s104
      %s122 = sphi 0, %s122
      %s124 = sphi 0, %s122
      %s125 = sphi 0, %s124
      %s139 = sphi 0, %s125
      %s143 = sphi 0, %s143
      %s145 = sphi 0, %s143
      %s146 = sphi 0, %s145
      %s160 = sphi 0, %s146
      %s164 = sphi 0, %s164
      %s166 = sphi 0, %s164
      %s167 = sphi 0, %s166
      %s181 = sphi 0, %s167
      %s187 = sphi 0, %s189
      %s190 = sphi 0, %s187
      %s191 = sphi 0, %s190
      %s207 = sphi 0, %s191
      %s213 = sphi 0, %s215
      %s216 = sphi 0, %s213
      %s217 = sphi 0, %s216
      %s233 = sphi 0, %s217
    $region4: #{tpu_custom_call.1} parent=1 // loop_header_branch
      %28 = sbr.rel (%p26) target = $region8
    $region5: #{tpu_custom_call.1} parent=1 // loop_body
      %s30 = ssub.s32 %s25, 1
      %s31 = ssub.s32 %s25, 2
      %s32 = sadd.s32 %s25, 1
      %s33 = ssub.s32 %s25, %s32
      %p34 = scmp.eq.s32.totalorder %s33, 0
      %s36 = sadd.s32 %s35, 1
      %s37 = scalar_select %p34, %s35, %s36
      %p40 = pneg %p34
      %p41 = scmp.eq.s32.totalorder %s25, 1
      %p42 = por %p40, %p41
      %p43 = scmp.ne.s32.totalorder %s35, %s38
      %p44 = scmp.eq.s32.totalorder %s25, 0
      %p45 = por %p43, %p44
      %p46 = scmp.ne.s32.totalorder %s35, %s38
      %p47 = scmp.eq.s32.totalorder %s30, 1
      %p48 = por %p46, %p47
      %p49 = scmp.ne.s32.totalorder %s38, %s39
      %p50 = scmp.eq.s32.totalorder %s30, 0
      %p51 = por %p49, %p50
      %p52 = scmp.ne.s32.totalorder %s38, %s39
      %p53 = scmp.eq.s32.totalorder %s31, 1
      %p54 = por %p52, %p53
      %p56 = scmp.ne.s32.totalorder %s39, %s55
      %p57 = scmp.eq.s32.totalorder %s31, 0
      %p58 = por %p56, %p57
      %s60 = sadd.s32 %s59, 1
      %p63 = scmp.eq.s32.totalorder %s25, 1
      %p64 = scmp.ne.s32.totalorder %s59, %s61
      %p65 = scmp.eq.s32.totalorder %s25, 0
      %p66 = por %p64, %p65
      %p67 = scmp.ne.s32.totalorder %s59, %s61
      %p68 = scmp.eq.s32.totalorder %s30, 1
      %p69 = por %p67, %p68
      %p70 = scmp.ne.s32.totalorder %s61, %s62
      %p71 = scmp.eq.s32.totalorder %s30, 0
      %p72 = por %p70, %p71
      %p73 = scmp.ne.s32.totalorder %s61, %s62
      %p74 = scmp.eq.s32.totalorder %s31, 1
      %p75 = por %p73, %p74
      %p77 = scmp.ne.s32.totalorder %s62, %s76
      %p78 = scmp.eq.s32.totalorder %s31, 0
      %p79 = por %p77, %p78
      %s81 = sadd.s32 %s80, 1
      %p84 = scmp.eq.s32.totalorder %s25, 1
      %p85 = scmp.ne.s32.totalorder %s80, %s82
      %p86 = scmp.eq.s32.totalorder %s25, 0
      %p87 = por %p85, %p86
      %p88 = scmp.ne.s32.totalorder %s80, %s82
      %p89 = scmp.eq.s32.totalorder %s30, 1
      %p90 = por %p88, %p89
      %p91 = scmp.ne.s32.totalorder %s82, %s83
      %p92 = scmp.eq.s32.totalorder %s30, 0
      %p93 = por %p91, %p92
      %p94 = scmp.ne.s32.totalorder %s82, %s83
      %p95 = scmp.eq.s32.totalorder %s31, 1
      %p96 = por %p94, %p95
      %p98 = scmp.ne.s32.totalorder %s83, %s97
      %p99 = scmp.eq.s32.totalorder %s31, 0
      %p100 = por %p98, %p99
      %s102 = sadd.s32 %s101, 1
      %p105 = scmp.eq.s32.totalorder %s25, 1
      %p106 = scmp.ne.s32.totalorder %s101, %s103
      %p107 = scmp.eq.s32.totalorder %s25, 0
      %p108 = por %p106, %p107
      %p109 = scmp.ne.s32.totalorder %s101, %s103
      %p110 = scmp.eq.s32.totalorder %s30, 1
      %p111 = por %p109, %p110
      %p112 = scmp.ne.s32.totalorder %s103, %s104
      %p113 = scmp.eq.s32.totalorder %s30, 0
      %p114 = por %p112, %p113
      %p115 = scmp.ne.s32.totalorder %s103, %s104
      %p116 = scmp.eq.s32.totalorder %s31, 1
      %p117 = por %p115, %p116
      %p119 = scmp.ne.s32.totalorder %s104, %s118
      %p120 = scmp.eq.s32.totalorder %s31, 0
      %p121 = por %p119, %p120
      %s123 = sadd.s32 %s122, 1
      %p126 = scmp.eq.s32.totalorder %s25, 1
      %p127 = scmp.ne.s32.totalorder %s122, %s124
      %p128 = scmp.eq.s32.totalorder %s25, 0
      %p129 = por %p127, %p128
      %p130 = scmp.ne.s32.totalorder %s122, %s124
      %p131 = scmp.eq.s32.totalorder %s30, 1
      %p132 = por %p130, %p131
      %p133 = scmp.ne.s32.totalorder %s124, %s125
      %p134 = scmp.eq.s32.totalorder %s30, 0
      %p135 = por %p133, %p134
      %p136 = scmp.ne.s32.totalorder %s124, %s125
      %p137 = scmp.eq.s32.totalorder %s31, 1
      %p138 = por %p136, %p137
      %p140 = scmp.ne.s32.totalorder %s125, %s139
      %p141 = scmp.eq.s32.totalorder %s31, 0
      %p142 = por %p140, %p141
      %s144 = sadd.s32 %s143, 1
      %p147 = scmp.eq.s32.totalorder %s25, 1
      %p148 = scmp.ne.s32.totalorder %s143, %s145
      %p149 = scmp.eq.s32.totalorder %s25, 0
      %p150 = por %p148, %p149
      %p151 = scmp.ne.s32.totalorder %s143, %s145
      %p152 = scmp.eq.s32.totalorder %s30, 1
      %p153 = por %p151, %p152
      %p154 = scmp.ne.s32.totalorder %s145, %s146
      %p155 = scmp.eq.s32.totalorder %s30, 0
      %p156 = por %p154, %p155
      %p157 = scmp.ne.s32.totalorder %s145, %s146
      %p158 = scmp.eq.s32.totalorder %s31, 1
      %p159 = por %p157, %p158
      %p161 = scmp.ne.s32.totalorder %s146, %s160
      %p162 = scmp.eq.s32.totalorder %s31, 0
      %p163 = por %p161, %p162
      %s165 = sadd.s32 %s164, 1
      %p168 = scmp.eq.s32.totalorder %s25, 1
      %p169 = scmp.ne.s32.totalorder %s164, %s166
      %p170 = scmp.eq.s32.totalorder %s25, 0
      %p171 = por %p169, %p170
      %p172 = scmp.ne.s32.totalorder %s164, %s166
      %p173 = scmp.eq.s32.totalorder %s30, 1
      %p174 = por %p172, %p173
      %p175 = scmp.ne.s32.totalorder %s166, %s167
      %p176 = scmp.eq.s32.totalorder %s30, 0
      %p177 = por %p175, %p176
      %p178 = scmp.ne.s32.totalorder %s166, %s167
      %p179 = scmp.eq.s32.totalorder %s31, 1
      %p180 = por %p178, %p179
      %p182 = scmp.ne.s32.totalorder %s167, %s181
      %p183 = scmp.eq.s32.totalorder %s31, 0
      %p184 = por %p182, %p183
      %s185 = ssub.s32 %s25, %s32
      %p186 = scmp.eq.s32.totalorder %s185, 0
      %s188 = sadd.s32 %s187, 1
      %s189 = scalar_select %p186, %s187, %s188
      %p192 = pneg %p186
      %p193 = scmp.eq.s32.totalorder %s25, 1
      %p194 = por %p192, %p193
      %p195 = scmp.ne.s32.totalorder %s187, %s190
      %p196 = scmp.eq.s32.totalorder %s25, 0
      %p197 = por %p195, %p196
      %p198 = scmp.ne.s32.totalorder %s187, %s190
      %p199 = scmp.eq.s32.totalorder %s30, 1
      %p200 = por %p198, %p199
      %p201 = scmp.ne.s32.totalorder %s190, %s191
      %p202 = scmp.eq.s32.totalorder %s30, 0
      %p203 = por %p201, %p202
      %p204 = scmp.ne.s32.totalorder %s190, %s191
      %p205 = scmp.eq.s32.totalorder %s31, 1
      %p206 = por %p204, %p205
      %p208 = scmp.ne.s32.totalorder %s191, %s207
      %p209 = scmp.eq.s32.totalorder %s31, 0
      %p210 = por %p208, %p209
      %s211 = ssub.s32 %s25, %s32
      %p212 = scmp.eq.s32.totalorder %s211, 0
      %s214 = sadd.s32 %s213, 1
      %s215 = scalar_select %p212, %s213, %s214
      %p218 = pneg %p212
      %p219 = scmp.eq.s32.totalorder %s25, 1
      %p220 = por %p218, %p219
      %p221 = scmp.ne.s32.totalorder %s213, %s216
      %p222 = scmp.eq.s32.totalorder %s25, 0
      %p223 = por %p221, %p222
      %p224 = scmp.ne.s32.totalorder %s213, %s216
      %p225 = scmp.eq.s32.totalorder %s30, 1
      %p226 = por %p224, %p225
      %p227 = scmp.ne.s32.totalorder %s216, %s217
      %p228 = scmp.eq.s32.totalorder %s30, 0
      %p229 = por %p227, %p228
      %p230 = scmp.ne.s32.totalorder %s216, %s217
      %p231 = scmp.eq.s32.totalorder %s31, 1
      %p232 = por %p230, %p231
      %p234 = scmp.ne.s32.totalorder %s217, %s233
      %p235 = scmp.eq.s32.totalorder %s31, 0
      %p236 = por %p234, %p235
      %p237 = scmp.le.s32.totalorder 1, %s25
      %p238 = scmp.lt.s32.totalorder %s25, 3
      %p239 = pnand %p237, %p238
      %p240 = pneg %p239
      // Predicated region
      $region9: #{tpu_custom_call.1} parent=5 // pred_check
        _
      $region10: #{tpu_custom_call.1} parent=5 // pred_check_branch
        %242 = sbr.rel (%p239) target = $region12
      $region11: #{tpu_custom_call.1} parent=5 // pred_region
        %s243 = ssub.s32 %s25, 1
        // Predicated region
        $region13: #{tpu_custom_call.1} parent=11 // pred_check
          %p244 = pneg %p72
        $region14: #{tpu_custom_call.1} parent=11 // pred_check_branch
          %246 = sbr.rel (%p244) target = $region16
        $region15: #{tpu_custom_call.1} parent=11 // pred_region
          %248 = vsyncadd [#allocation6], 0
          %s249 = sshll.u32 %s1, 4
          %s250 = int_to_ptr.hbm [resolvable:$true] %s249
          %s251 = sshll.u32 [#allocation5], 4
          %s252 = int_to_ptr.vmem [resolvable:$true] %s251
          %257 = dma.hbm_to_vmem [thread:$0]  %s250, 1536, %s252, [#allocation6], 128, 128, 8
        $region16: #{tpu_custom_call.1} parent=11 // pred_fallthru
          _
        // Predicated region
        $region17: #{tpu_custom_call.1} parent=11 // pred_check
          %p258 = pneg %p93
        $region18: #{tpu_custom_call.1} parent=11 // pred_check_branch
          %260 = sbr.rel (%p258) target = $region20
        $region19: #{tpu_custom_call.1} parent=11 // pred_region
          _
        $region20: #{tpu_custom_call.1} parent=11 // pred_fallthru
          _
        // Predicated region
        $region21: #{tpu_custom_call.1} parent=11 // pred_check
          %p261 = pneg %p114
        $region22: #{tpu_custom_call.1} parent=11 // pred_check_branch
          %263 = sbr.rel (%p261) target = $region24
        $region23: #{tpu_custom_call.1} parent=11 // pred_region
          _
        $region24: #{tpu_custom_call.1} parent=11 // pred_fallthru
          _
        // Predicated region
        $region25: #{tpu_custom_call.1} parent=11 // pred_check
          %p264 = pneg %p135
        $region26: #{tpu_custom_call.1} parent=11 // pred_check_branch
          %266 = sbr.rel (%p264) target = $region28
        $region27: #{tpu_custom_call.1} parent=11 // pred_region
          _
        $region28: #{tpu_custom_call.1} parent=11 // pred_fallthru
          _
        // Predicated region
        $region29: #{tpu_custom_call.1} parent=11 // pred_check
          %p267 = pneg %p156
        $region30: #{tpu_custom_call.1} parent=11 // pred_check_branch
          %269 = sbr.rel (%p267) target = $region32
        $region31: #{tpu_custom_call.1} parent=11 // pred_region
          _
        $region32: #{tpu_custom_call.1} parent=11 // pred_fallthru
          _
        // Predicated region
        $region33: #{tpu_custom_call.1} parent=11 // pred_check
          %p270 = pneg %p177
        $region34: #{tpu_custom_call.1} parent=11 // pred_check_branch
          %272 = sbr.rel (%p270) target = $region36
        $region35: #{tpu_custom_call.1} parent=11 // pred_region
          _
        $region36: #{tpu_custom_call.1} parent=11 // pred_fallthru
          _
      $region12: #{tpu_custom_call.1} parent=5 // pred_fallthru
        _
      %p273 = scmp.lt.s32.totalorder %s25, 2
      // Predicated region
      $region37: #{tpu_custom_call.1} parent=5 // pred_check
        %p274 = pneg %p273
      $region38: #{tpu_custom_call.1} parent=5 // pred_check_branch
        %276 = sbr.rel (%p274) target = $region40
      $region39: #{tpu_custom_call.1} parent=5 // pred_region
        // Predicated region
        $region41: #{tpu_custom_call.1} parent=39 // pred_check
          %p277 = pneg %p45
        $region42: #{tpu_custom_call.1} parent=39 // pred_check_branch
          %279 = sbr.rel (%p277) target = $region44
        $region43: #{tpu_custom_call.1} parent=39 // pred_region
          %s280 = sand.u32 %s35, 1
          %s281 = scalar_lea.sflag [#allocation3], %s280
          %s282 = sand.u32 %s35, 1
          %s283 = smul.addr %s282, 8
          %s284 = scalar_lea.vmem [#allocation2], %s283
          %286 = vsyncadd %s281, 0
          %s287 = smul.addr %s25, 8
          %s288 = scalar_lea.hbm %s0, %s287
          %s290 = sshll.u32 %s288, 4
          %s291 = int_to_ptr.hbm [resolvable:$true] %s290
          %s292 = sshll.u32 %s284, 4
          %s293 = int_to_ptr.vmem [resolvable:$true] %s292
          %295 = dma.hbm_to_vmem [thread:$0]  %s291, 128, %s293, %s281
        $region44: #{tpu_custom_call.1} parent=39 // pred_fallthru
          _
      $region40: #{tpu_custom_call.1} parent=5 // pred_fallthru
        _
      %p296 = scmp.le.s32.totalorder 1, %s25
      %p297 = scmp.lt.s32.totalorder %s25, 3
      %p298 = pnand %p296, %p297
      %p299 = pneg %p298
      // Predicated region
      $region45: #{tpu_custom_call.1} parent=5 // pred_check
        _
      $region46: #{tpu_custom_call.1} parent=5 // pred_check_branch
        %301 = sbr.rel (%p298) target = $region48
      $region47: #{tpu_custom_call.1} parent=5 // pred_region
        %s302 = ssub.s32 %s25, 1
        %s303 = sand.u32 %s38, 1
        %s304 = scalar_lea.sflag [#allocation3], %s303
        %s305 = sand.u32 %s38, 1
        %s306 = smul.addr %s305, 8
        %s307 = scalar_lea.vmem [#allocation2], %s306
        // Predicated region
        $region49: #{tpu_custom_call.1} parent=47 // pred_check
          %p308 = pneg %p51
        $region50: #{tpu_custom_call.1} parent=47 // pred_check_branch
          %310 = sbr.rel (%p308) target = $region52
        $region51: #{tpu_custom_call.1} parent=47 // pred_region
          %312 = dma.done %s304, 128
        $region52: #{tpu_custom_call.1} parent=47 // pred_fallthru
          _
        // Predicated region
        $region53: #{tpu_custom_call.1} parent=47 // pred_check
          %p313 = pneg %p72
        $region54: #{tpu_custom_call.1} parent=47 // pred_check_branch
          %315 = sbr.rel (%p313) target = $region56
        $region55: #{tpu_custom_call.1} parent=47 // pred_region
          %317 = dma.done [#allocation6], 1536
        $region56: #{tpu_custom_call.1} parent=47 // pred_fallthru
          _
        %s318 = sand.u32 %s38, 1
        %s319 = scalar_lea.sflag [#allocation3], %s318
        %s320 = sand.u32 %s38, 1
        %s321 = smul.addr %s320, 8
        %s322 = scalar_lea.vmem [#allocation2], %s321
        %p323 = pneg %p51
        %p324 = pneg %p48
        %p325 = pneg %p72
        %p326 = pneg %p69
        %p327 = pneg %p93
        %p328 = pneg %p90
        %p329 = pneg %p114
        %p330 = pneg %p111
        %p331 = pneg %p135
        %p332 = pneg %p132
        %p333 = pneg %p156
        %p334 = pneg %p153
        %p335 = pneg %p177
        %p336 = pneg %p174
        %p337 = pneg %p203
        %p338 = pneg %p200
        %s339 = sand.u32 %s190, 1
        %s340 = scalar_lea.sflag [#allocation4], %s339
        %s341 = sand.u32 %s190, 1
        %s342 = smul.addr %s341, 16
        %s343 = scalar_lea.vmem [#allocation7], %s342
        %p344 = pneg %p229
        %p345 = pneg %p226
        %s346 = sand.u32 %s216, 1
        %s347 = scalar_lea.sflag [#allocation9], %s346
        %s348 = sand.u32 %s216, 1
        %s349 = smul.addr %s348, 8
        %s350 = scalar_lea.vmem [#allocation8], %s349
        %v351 = vld [vmem:[%s307] sm:$0xff]
        %v352 = vld [vmem:[#allocation5] sm:$0xff]
        %v353 = vld [vmem:[#allocation5 + $0x8] sm:$0xff]
        %v354 = vld [vmem:[#allocation5 + $0x10] sm:$0xff]
        %v355 = vld [vmem:[#allocation5 + $0x18] sm:$0xff]
        %v356 = vld [vmem:[%s2] sm:$0x1]
        %v358 = vperm.slane %v356, 0
        %vm360 = vcmask 261120
        %v362 = vsel %vm360, %v351, 0
        %364 = vmatpush.msra.mxu0 0.0
        %365 = vmatpush.msra.mxu0 0.0
        %366 = vmatpush.msra.mxu0 0.0
        %367 = vmatpush.msra.mxu0 0.0
        %368 = vmatpush.msra.mxu0 0.0
        %369 = vmatpush.msra.mxu0 0.0
        %370 = vmatpush.msra.mxu0 0.0
        %371 = vmatpush.msra.mxu0 0.0
        %372 = vmatpush.msra.mxu0 0.0
        %373 = vmatpush.msra.mxu0 0.0
        %374 = vmatpush.msra.mxu0 0.0
        %375 = vmatpush.msra.mxu0 0.0
        %376 = vmatpush.msra.mxu0 %v355
        %377 = vmatpush.msra.mxu0 %v354
        %378 = vmatpush.msra.mxu0 %v353
        %379 = vmatpush.msra.mxu0 %v352
        %380 = vmatmul.f32.gmra.mxu0 %v362
        %v381 = vpop.f32.mrf.mxu0
        %v382 = vadd.f32 %v358, %v381
        %383 = vdwg.mxu0
        %s384 = scalar_lea.vmem [#allocation5], 32
        %v385 = vld [vmem:[%s384] sm:$0xff]
        %v386 = vld [vmem:[%s384 + $0x8] sm:$0xff]
        %v387 = vld [vmem:[%s384 + $0x10] sm:$0xff]
        %v388 = vld [vmem:[%s384 + $0x18] sm:$0xff]
        %s389 = scalar_lea.vmem %s2, 1
        %v390 = vld [vmem:[%s389] sm:$0x1]
        %v392 = vperm.slane %v390, 0
        %394 = vmatpush.msra.mxu0 0.0
        %395 = vmatpush.msra.mxu0 0.0
        %396 = vmatpush.msra.mxu0 0.0
        %397 = vmatpush.msra.mxu0 0.0
        %398 = vmatpush.msra.mxu0 0.0
        %399 = vmatpush.msra.mxu0 0.0
        %400 = vmatpush.msra.mxu0 0.0
        %401 = vmatpush.msra.mxu0 0.0
        %402 = vmatpush.msra.mxu0 0.0
        %403 = vmatpush.msra.mxu0 0.0
        %404 = vmatpush.msra.mxu0 0.0
        %405 = vmatpush.msra.mxu0 0.0
        %406 = vmatpush.msra.mxu0 %v388
        %407 = vmatpush.msra.mxu0 %v387
        %408 = vmatpush.msra.mxu0 %v386
        %409 = vmatpush.msra.mxu0 %v385
        %410 = vmatmul.f32.gmra.mxu0 %v362
        %v411 = vpop.f32.mrf.mxu0
        %v412 = vadd.f32 %v392, %v411
        %413 = vdwg.mxu0
        %s414 = scalar_lea.vmem [#allocation5], 64
        %v415 = vld [vmem:[%s414] sm:$0xff]
        %v416 = vld [vmem:[%s414 + $0x8] sm:$0xff]
        %v417 = vld [vmem:[%s414 + $0x10] sm:$0xff]
        %v418 = vld [vmem:[%s414 + $0x18] sm:$0xff]
        %s419 = scalar_lea.vmem %s2, 2
        %v420 = vld [vmem:[%s419] sm:$0x1]
        %v422 = vperm.slane %v420, 0
        %424 = vmatpush.msra.mxu0 0.0
        %425 = vmatpush.msra.mxu0 0.0
        %426 = vmatpush.msra.mxu0 0.0
        %427 = vmatpush.msra.mxu0 0.0
        %428 = vmatpush.msra.mxu0 0.0
        %429 = vmatpush.msra.mxu0 0.0
        %430 = vmatpush.msra.mxu0 0.0
        %431 = vmatpush.msra.mxu0 0.0
        %432 = vmatpush.msra.mxu0 0.0
        %433 = vmatpush.msra.mxu0 0.0
        %434 = vmatpush.msra.mxu0 0.0
        %435 = vmatpush.msra.mxu0 0.0
        %436 = vmatpush.msra.mxu0 %v418
        %437 = vmatpush.msra.mxu0 %v417
        %438 = vmatpush.msra.mxu0 %v416
        %439 = vmatpush.msra.mxu0 %v415
        %440 = vmatmul.f32.gmra.mxu0 %v362
        %v441 = vpop.f32.mrf.mxu0
        %v442 = vadd.f32 %v422, %v441
        %443 = vdwg.mxu0
        %v445 = vsel %vm360, %v382, 0
        %v448 = vsel %vm360, %v412, 0
        %450 = vmatpush.xpose.msra.mxu0 0.0
        %451 = vmatpush.xpose.msra.mxu0 0.0
        %452 = vmatpush.xpose.msra.mxu0 0.0
        %453 = vmatpush.xpose.msra.mxu0 0.0
        %454 = vmatpush.xpose.msra.mxu0 0.0
        %455 = vmatpush.xpose.msra.mxu0 0.0
        %456 = vmatpush.xpose.msra.mxu0 0.0
        %457 = vmatpush.xpose.msra.mxu0 0.0
        %458 = vmatpush.xpose.msra.mxu0 0.0
        %459 = vmatpush.xpose.msra.mxu0 0.0
        %460 = vmatpush.xpose.msra.mxu0 0.0
        %461 = vmatpush.xpose.msra.mxu0 0.0
        %462 = vmatpush.xpose.msra.mxu0 0.0
        %463 = vmatpush.xpose.msra.mxu0 0.0
        %464 = vmatpush.xpose.msra.mxu0 0.0
        %465 = vmatpush.xpose.msra.mxu0 %v448
        %466 = vmatmul.f32.gmra.mxu0 %v445
        %v467 = vpop.f32.mrf.mxu0
        %v468 = vadd.f32 0.0, %v467
        %469 = vdwg.mxu0
        %v470 = vmul.f32 %v468, 0.17677669
        %vm471 = vcmask 64512
        %v472 = vsel %vm471, %v470, -inf
        %473 = vmax.xlane.f32.xlu0 %v472
        %v474 = vpop.xlane.xlu0 %473
        %v475 = vsub.f32 %v470, %v474
        %v476 = vmul.f32 %v475, 1.442695
        %v477 = vpow.pop %v476
        %v478 = vsel %vm471, %v477, 0.0
        %479 = vadd.xlane.f32.xlu0 %v478
        %v480 = vpop.xlane.xlu0 %479
        %v481 = vrcp.pop %v480
        %v482 = vmul.f32 %v480, %v481
        %v483 = vsub.f32 2.0, %v482
        %v484 = vmul.f32 %v481, %v483
        %v485 = vmul.f32 %v477, %v484
        %v487 = vsel %vm471, %v485, 0
        %489 = vmatpush.msra.mxu0 0.0
        %490 = vmatpush.msra.mxu0 0.0
        %491 = vmatpush.msra.mxu0 0.0
        %492 = vmatpush.msra.mxu0 0.0
        %493 = vmatpush.msra.mxu0 0.0
        %494 = vmatpush.msra.mxu0 0.0
        %495 = vmatpush.msra.mxu0 0.0
        %496 = vmatpush.msra.mxu0 0.0
        %497 = vmatpush.msra.mxu0 0.0
        %498 = vmatpush.msra.mxu0 0.0
        %499 = vmatpush.msra.mxu0 0.0
        %500 = vmatpush.msra.mxu0 0.0
        %501 = vmatpush.msra.mxu0 0.0
        %502 = vmatpush.msra.mxu0 0.0
        %503 = vmatpush.msra.mxu0 0.0
        %504 = vmatpush.msra.mxu0 %v442
        %505 = vmatmul.f32.gmra.mxu0 %v487
        %v506 = vpop.f32.mrf.mxu0
        %v507 = vadd.f32 0.0, %v506
        %508 = vdwg.mxu0
        %v509 = vld [vmem:[%s3] sm:$0xff]
        %v510 = vld [vmem:[%s3 + $0x8] sm:$0xff]
        %v511 = vld [vmem:[%s3 + $0x10] sm:$0xff]
        %v512 = vld [vmem:[%s3 + $0x18] sm:$0xff]
        %v513 = vld [vmem:[%s4] sm:$0x1]
        %v515 = vperm.slane %v513, 0
        %v518 = vsel %vm360, %v507, 0
        %520 = vmatpush.msra.mxu0 0.0
        %521 = vmatpush.msra.mxu0 0.0
        %522 = vmatpush.msra.mxu0 0.0
        %523 = vmatpush.msra.mxu0 0.0
        %524 = vmatpush.msra.mxu0 0.0
        %525 = vmatpush.msra.mxu0 0.0
        %526 = vmatpush.msra.mxu0 0.0
        %527 = vmatpush.msra.mxu0 0.0
        %528 = vmatpush.msra.mxu0 0.0
        %529 = vmatpush.msra.mxu0 0.0
        %530 = vmatpush.msra.mxu0 0.0
        %531 = vmatpush.msra.mxu0 0.0
        %532 = vmatpush.msra.mxu0 %v512
        %533 = vmatpush.msra.mxu0 %v511
        %534 = vmatpush.msra.mxu0 %v510
        %535 = vmatpush.msra.mxu0 %v509
        %536 = vmatmul.f32.gmra.mxu0 %v518
        %v537 = vpop.f32.mrf.mxu0
        %v538 = vadd.f32 %v515, %v537
        %539 = vdwg.mxu0
        %v540 = vadd.f32 %v351, %v538
        %v541 = vld [vmem:[%s5] sm:$0xff]
        %v542 = vld [vmem:[%s5 + $0x8] sm:$0xff]
        %v544 = vsel %vm471, %v541, 0
        %v547 = vsel %vm471, %v542, 0
        %549 = vmatpush.msra.mxu0 0.0
        %550 = vmatpush.msra.mxu0 0.0
        %551 = vmatpush.msra.mxu0 0.0
        %552 = vmatpush.msra.mxu0 0.0
        %553 = vmatpush.msra.mxu0 0.0
        %554 = vmatpush.msra.mxu0 0.0
        %555 = vmatpush.msra.mxu0 0.0
        %556 = vmatpush.msra.mxu0 0.0
        %557 = vmatpush.msra.mxu0 0.0
        %558 = vmatpush.msra.mxu0 0.0
        %559 = vmatpush.msra.mxu0 0.0
        %560 = vmatpush.msra.mxu0 0.0
        %561 = vmatpush.msra.mxu0 0.0
        %562 = vmatpush.msra.mxu0 0.0
        %563 = vmatpush.msra.mxu0 0.0
        %564 = vmatpush.msra.mxu0 %v540
        %565 = vmatmul.f32.gmra.mxu0 %v544
        %v566 = vpop.f32.mrf.mxu0
        %v567 = vadd.f32 0.0, %v566
        %568 = vmatmul.f32.gmra.mxu0 %v547
        %v569 = vpop.f32.mrf.mxu0
        %v570 = vadd.f32 0.0, %v569
        %571 = vdwg.mxu0
        %v572 = vld [vmem:[%s6] sm:$0xff]
        %v573 = vld [vmem:[%s6 + $0x8] sm:$0xff]
        %575 = vset.pattern.permute.xlu0 0
        %576 = vperm.xlu0 %575, %v572
        %v577 = vpop.permute.xlu0 %576
        %580 = vset.pattern.permute.xlu0 0
        %581 = vperm.xlu0 %580, %v573
        %v582 = vpop.permute.xlu0 %581
        %v584 = vadd.f32 %v567, %v577
        %v585 = vadd.f32 %v570, %v582
        %vm586 = vcmp.gt.f32.partialorder %v584, 0.0
        %vm587 = vcmp.gt.f32.partialorder %v585, 0.0
        %v588 = vmin.f32 %v584, 0.0
        %v589 = vmin.f32 %v585, 0.0
        %v590 = vmul.f32 %v588, 1.442695
        %v591 = vpow.pop %v590
        %v592 = vmul.f32 %v589, 1.442695
        %v593 = vpow.pop %v592
        %v594 = vsub.f32 %v591, 1.0
        %v595 = vsub.f32 %v593, 1.0
        %v596 = vsel %vm586, %v584, %v594
        %v597 = vsel %vm587, %v585, %v595
        %598 = vst.msk [vmem:[%s343] sm:$0xff] %vm360, %v596
        %599 = vst.msk [vmem:[%s343 + $0x8] sm:$0xff] %vm360, %v597
        %600 = vst.msk [vmem:[%s350] sm:$0xff] %vm471, %v485
        %s601 = sand.u32 %s190, 1
        %s602 = scalar_lea.sflag [#allocation4], %s601
        %s603 = sand.u32 %s190, 1
        %s604 = smul.addr %s603, 16
        %s605 = scalar_lea.vmem [#allocation7], %s604
        %s606 = sand.u32 %s216, 1
        %s607 = scalar_lea.sflag [#allocation9], %s606
        %s608 = sand.u32 %s216, 1
        %s609 = smul.addr %s608, 8
        %s610 = scalar_lea.vmem [#allocation8], %s609
        // Predicated region
        $region57: #{tpu_custom_call.1} parent=47 // pred_check
          %p611 = pneg %p200
        $region58: #{tpu_custom_call.1} parent=47 // pred_check_branch
          %613 = sbr.rel (%p611) target = $region60
        $region59: #{tpu_custom_call.1} parent=47 // pred_region
          %615 = vsyncadd %s602, 0
          %s616 = smul.addr %s30, 2
          %s617 = smul.addr %s616, 8
          %s618 = scalar_lea.hbm %s7, %s617
          %s619 = sshll.u32 %s605, 4
          %s620 = int_to_ptr.vmem [resolvable:$true] %s619
          %s621 = sshll.u32 %s618, 4
          %s622 = int_to_ptr.hbm [resolvable:$true] %s621
          %627 = dma.vmem_to_hbm [thread:$0]  %s620, 256, %s622, %s602, 128, 128, 8
        $region60: #{tpu_custom_call.1} parent=47 // pred_fallthru
          _
        // Predicated region
        $region61: #{tpu_custom_call.1} parent=47 // pred_check
          %p628 = pneg %p226
        $region62: #{tpu_custom_call.1} parent=47 // pred_check_branch
          %630 = sbr.rel (%p628) target = $region64
        $region63: #{tpu_custom_call.1} parent=47 // pred_region
          %632 = vsyncadd %s607, 0
          %s633 = smul.addr %s30, 8
          %s634 = scalar_lea.hbm %s8, %s633
          %s636 = sshll.u32 %s610, 4
          %s637 = int_to_ptr.vmem [resolvable:$true] %s636
          %s638 = sshll.u32 %s634, 4
          %s639 = int_to_ptr.hbm [resolvable:$true] %s638
          %641 = dma.vmem_to_hbm [thread:$0]  %s637, 128, %s639, %s607
        $region64: #{tpu_custom_call.1} parent=47 // pred_fallthru
          _
      $region48: #{tpu_custom_call.1} parent=5 // pred_fallthru
        _
      %p642 = scmp.le.s32.totalorder 2, %s25
      // Predicated region
      $region65: #{tpu_custom_call.1} parent=5 // pred_check
        %p643 = pneg %p642
      $region66: #{tpu_custom_call.1} parent=5 // pred_check_branch
        %645 = sbr.rel (%p643) target = $region68
      $region67: #{tpu_custom_call.1} parent=5 // pred_region
        %s646 = ssub.s32 %s25, 2
        // Predicated region
        $region69: #{tpu_custom_call.1} parent=67 // pred_check
          %p647 = pneg %p206
        $region70: #{tpu_custom_call.1} parent=67 // pred_check_branch
          %649 = sbr.rel (%p647) target = $region72
        $region71: #{tpu_custom_call.1} parent=67 // pred_region
          %s650 = sand.u32 %s191, 1
          %s651 = scalar_lea.sflag [#allocation4], %s650
          %s652 = sand.u32 %s191, 1
          %s653 = smul.addr %s652, 16
          %s654 = scalar_lea.vmem [#allocation7], %s653
          %656 = dma.done %s651, 256
        $region72: #{tpu_custom_call.1} parent=67 // pred_fallthru
          _
        // Predicated region
        $region73: #{tpu_custom_call.1} parent=67 // pred_check
          %p657 = pneg %p232
        $region74: #{tpu_custom_call.1} parent=67 // pred_check_branch
          %659 = sbr.rel (%p657) target = $region76
        $region75: #{tpu_custom_call.1} parent=67 // pred_region
          %s660 = sand.u32 %s217, 1
          %s661 = scalar_lea.sflag [#allocation9], %s660
          %s662 = sand.u32 %s217, 1
          %s663 = smul.addr %s662, 8
          %s664 = scalar_lea.vmem [#allocation8], %s663
          %666 = dma.done %s661, 128
        $region76: #{tpu_custom_call.1} parent=67 // pred_fallthru
          _
      $region68: #{tpu_custom_call.1} parent=5 // pred_fallthru
        _
    $region6: #{tpu_custom_call.1} parent=1 // loop_footer
      %s29 = sadd.s32 1, %s25
    $region7: #{tpu_custom_call.1} parent=1 // loop_footer_branch
      %24 = sbr.rel target = $region3
    $region8: #{tpu_custom_call.1} parent=1 // loop_exit
      _
    %667 = vsyncpa [#allocation3], 1
    %s668 = scalar_lea.sflag [#allocation3], 1
    %669 = vsyncpa %s668, 1
    %670 = vsyncpa [#allocation6], 1
    %671 = vsyncpa [#allocation4], 1
    %s672 = scalar_lea.sflag [#allocation4], 1
    %673 = vsyncpa %s672, 1
    %674 = vsyncpa [#allocation9], 1
    %s675 = scalar_lea.sflag [#allocation9], 1
    %676 = vsyncpa %s675, 1

</llo_original>
